<compile_context>
chip_gen: v6e
topology: v6e:2x2x1
jax: 0.10.0
libtpu: 0.0.40
codegen_flags: <defaults>
</compile_context>

<pallas_src>
import jax
import jax.numpy as jnp
from jax.experimental import pallas as pl
from jax.experimental.pallas import tpu as pltpu

LANE = 128
SUBLANE = 8


def _round_up(a, b):
    return ((a + b - 1) // b) * b


def _comloss_sums_kernel(x_ref, t_ref, sp_ref, st_ref, spt_ref, sd_ref):
    """One grid step: sigmoid + raw partial sums into per-split accumulators.

    x_ref/t_ref: (B, rb, 128) tile. Outputs (squeezed leading split dim):
    (B, 128) lane-wise partial sums, revisited across the inner "arbitrary"
    reduction axis.
    """
    k = pl.program_id(1)

    @pl.when(k == 0)
    def _():
        sp_ref[...] = jnp.zeros_like(sp_ref)
        st_ref[...] = jnp.zeros_like(st_ref)
        spt_ref[...] = jnp.zeros_like(spt_ref)
        sd_ref[...] = jnp.zeros_like(sd_ref)

    x = x_ref[...].astype(jnp.float32)
    t = t_ref[...].astype(jnp.float32)
    p = jax.nn.sigmoid(x)

    # Sublane reduce only (lane reduce is hoisted out of the hot loop).
    sp_ref[...] += jnp.sum(p, axis=1)
    st_ref[...] += jnp.sum(t, axis=1)
    spt_ref[...] += jnp.sum(p * t, axis=1)
    sd_ref[...] += jnp.sum(p * p + t * t, axis=1)


def com_loss(inp, target, *, pos_weight=0.5, reduction="mean",
             target_block_bytes=2 * 1024 * 1024, num_splits=2):
    """JAX/Pallas equivalent of ComLoss.forward with default hyperparams."""
    assert inp.shape[0] == target.shape[0], \
        "predict & target batch size don't match"
    B = inp.shape[0]
    x = inp.reshape(B, -1)
    t = target.reshape(B, -1)
    N = x.shape[1]

    # ---- tiling: pad N to a whole number of (8, 128)-aligned blocks ----
    n_rows = -(-N // LANE)                                   # ceil(N / 128)
    rows_per_split = _round_up(-(-n_rows // num_splits), SUBLANE)
    itemsize = max(jnp.dtype(x.dtype).itemsize, jnp.dtype(t.dtype).itemsize)
    rb = max(SUBLANE,
             (target_block_bytes // (B * LANE * itemsize)) // SUBLANE * SUBLANE)
    rb = min(rb, rows_per_split)                             # row-block (mult of 8)
    k_steps = -(-rows_per_split // rb)                       # inner grid length
    rows_padded = num_splits * k_steps * rb
    n_pad = rows_padded * LANE

    # Pad: x -> very negative (sigmoid == 0), t -> 0  => zero contribution to
    # all four raw sums, so derived num_neg/den_neg (using the true N) stay exact.
    pad = n_pad - N
    if pad > 0:
        x = jnp.pad(x, ((0, 0), (0, pad)), constant_values=-1e9)
        t = jnp.pad(t, ((0, 0), (0, pad)), constant_values=0)
    x3 = x.reshape(B, rows_padded, LANE)
    t3 = t.reshape(B, rows_padded, LANE)

    acc_shape = jax.ShapeDtypeStruct((num_splits, B, LANE), jnp.float32)
    in_block = pl.BlockSpec((B, rb, LANE), lambda s, k: (0, s * k_steps + k, 0))
    out_block = pl.BlockSpec((None, B, LANE), lambda s, k: (s, 0, 0))

    cost = pl.CostEstimate(
        flops=int(6 * B * rows_padded * LANE),
        transcendentals=int(B * rows_padded * LANE),
        bytes_accessed=int(x3.size * x3.dtype.itemsize
                           + t3.size * t3.dtype.itemsize
                           + 4 * num_splits * B * LANE * 4),
    )

    sp, st, spt, sd = pl.pallas_call(
        _comloss_sums_kernel,
        out_shape=(acc_shape, acc_shape, acc_shape, acc_shape),
        grid_spec=pltpu.PrefetchScalarGridSpec(
            num_scalar_prefetch=0,
            grid=(num_splits, k_steps),
            in_specs=[in_block, in_block],
            out_specs=[out_block, out_block, out_block, out_block],
            scratch_shapes=[],
        ),
        compiler_params=pltpu.CompilerParams(
            dimension_semantics=("parallel", "arbitrary"),
            vmem_limit_bytes=32 * 1024 * 1024,
        ),
        cost_estimate=cost,
    )(x3, t3)

    # ---- finalize (tiny, done in plain JAX): combine splits + lanes ----
    Sp = jnp.sum(sp, axis=(0, 2))     # (B,)  sum p
    St = jnp.sum(st, axis=(0, 2))     # (B,)  sum t
    Spt = jnp.sum(spt, axis=(0, 2))   # (B,)  sum p*t
    Sd = jnp.sum(sd, axis=(0, 2))     # (B,)  sum p^2 + t^2

    n_true = jnp.float32(N)
    num_pos = Spt
    den_pos = Sd
    num_neg = n_true - Sp - St + Spt                 # sum (1-p)(1-t)
    den_neg = 2.0 * n_true - 2.0 * (Sp + St) + Sd    # sum (1-p)^2 + (1-t)^2

    loss_pos = 1.0 - 2.0 * num_pos / den_pos
    loss_neg = 1.0 - 2.0 * num_neg / den_neg
    loss = jnp.log(loss_pos * pos_weight + loss_neg * (1.0 - pos_weight))

    if reduction == "mean":
        return jnp.mean(loss)
    elif reduction == "sum":
        return jnp.sum(loss)
    elif reduction == "none":
        return loss
    else:
        raise Exception("Unexpected reduction {}".format(reduction))


def _reference(inp, target, pos_weight=0.5):
    """Plain-JAX reference mirroring the PyTorch module (for sanity check)."""
    B = inp.shape[0]
    p = jax.nn.sigmoid(inp.reshape(B, -1).astype(jnp.float32))
    t = target.reshape(B, -1).astype(jnp.float32)
    num_pos = jnp.sum(p * t, axis=1)
    den_pos = jnp.sum(p ** 2 + t ** 2, axis=1)
    num_neg = jnp.sum((1 - p) * (1 - t), axis=1)
    den_neg = jnp.sum((1 - p) ** 2 + (1 - t) ** 2, axis=1)
    loss_pos = 1 - 2 * num_pos / den_pos
    loss_neg = 1 - 2 * num_neg / den_neg
    loss = jnp.log(loss_pos * pos_weight + loss_neg * (1 - pos_weight))
    return jnp.mean(loss)


if __name__ == "__main__":
    key = jax.random.PRNGKey(0)
    k1, k2 = jax.random.split(key)

    B, C, H, W = 2, 4, 16, 16  # NCHW, flattened to (2, 1024) inside the wrapper
    logits = jax.random.normal(k1, (B, C, H, W), dtype=jnp.float32)
    target = jax.random.bernoulli(k2, 0.3, (B, C, H, W)).astype(jnp.float32)

    loss = com_loss(logits, target)
    loss = jax.block_until_ready(loss)

    ref = _reference(logits, target)
    assert jnp.allclose(loss, ref, rtol=1e-4, atol=1e-5), (loss, ref)

    print("KERNEL_OK")
</pallas_src>

<mosaic_0001>
module attributes {stable_mosaic.version = 11 : i64} {
  func.func @_comloss_sums_kernel(%arg0: i32, %arg1: i32, %arg2: memref<2x8x128xf32, #tpu.memory_space<vmem>>, %arg3: memref<2x8x128xf32, #tpu.memory_space<vmem>>, %arg4: memref<1x2x128xf32, #tpu.memory_space<vmem>>, %arg5: memref<1x2x128xf32, #tpu.memory_space<vmem>>, %arg6: memref<1x2x128xf32, #tpu.memory_space<vmem>>, %arg7: memref<1x2x128xf32, #tpu.memory_space<vmem>>) attributes {dimension_semantics = [#tpu.dimension_semantics<parallel>, #tpu.dimension_semantics<arbitrary>], iteration_bounds = array<i64: 2, 1>, scalar_prefetch = 0 : i64, scratch_operands = 0 : i64, tpu.core_type = #tpu.core_type<tc>, window_params = [{transform_indices = @transform_0, window_bounds = array<i64: 2, 8, 128>}, {transform_indices = @transform_1, window_bounds = array<i64: 2, 8, 128>}, {transform_indices = @transform_2, window_bounds = array<i64: 1, 2, 128>}, {transform_indices = @transform_3, window_bounds = array<i64: 1, 2, 128>}, {transform_indices = @transform_4, window_bounds = array<i64: 1, 2, 128>}, {transform_indices = @transform_5, window_bounds = array<i64: 1, 2, 128>}]} {
    %c0_i32 = arith.constant 0 : i32
    %0 = arith.cmpi eq, %arg1, %c0_i32 : i32
    %1 = arith.extui %0 : i1 to i32
    %c0_i32_0 = arith.constant 0 : i32
    %2 = arith.cmpi ne, %1, %c0_i32_0 : i32
    scf.if %2 {
      %cst_34 = arith.constant 0.000000e+00 : f32
      %42 = vector.broadcast %cst_34 : f32 to vector<2x128xf32>
      %c0_35 = arith.constant 0 : index
      %c0_36 = arith.constant 0 : index
      %c0_37 = arith.constant 0 : index
      %43 = vector.load %arg4[%c0_35, %c0_36, %c0_37] : memref<1x2x128xf32, #tpu.memory_space<vmem>>, vector<1x2x128xf32>
      %44 = vector.shape_cast %43 : vector<1x2x128xf32> to vector<2x128xf32>
      %45 = vector.shape_cast %42 : vector<2x128xf32> to vector<1x2x128xf32>
      tpu.vector_store %arg4[%c0_35, %c0_36, %c0_37], %45 {strides = array<i32>} : memref<1x2x128xf32, #tpu.memory_space<vmem>>, vector<1x2x128xf32>,
      %cst_38 = arith.constant 0.000000e+00 : f32
      %46 = vector.broadcast %cst_38 : f32 to vector<2x128xf32>
      %c0_39 = arith.constant 0 : index
      %c0_40 = arith.constant 0 : index
      %c0_41 = arith.constant 0 : index
      %47 = vector.load %arg5[%c0_39, %c0_40, %c0_41] : memref<1x2x128xf32, #tpu.memory_space<vmem>>, vector<1x2x128xf32>
      %48 = vector.shape_cast %47 : vector<1x2x128xf32> to vector<2x128xf32>
      %49 = vector.shape_cast %46 : vector<2x128xf32> to vector<1x2x128xf32>
      tpu.vector_store %arg5[%c0_39, %c0_40, %c0_41], %49 {strides = array<i32>} : memref<1x2x128xf32, #tpu.memory_space<vmem>>, vector<1x2x128xf32>,
      %cst_42 = arith.constant 0.000000e+00 : f32
      %50 = vector.broadcast %cst_42 : f32 to vector<2x128xf32>
      %c0_43 = arith.constant 0 : index
      %c0_44 = arith.constant 0 : index
      %c0_45 = arith.constant 0 : index
      %51 = vector.load %arg6[%c0_43, %c0_44, %c0_45] : memref<1x2x128xf32, #tpu.memory_space<vmem>>, vector<1x2x128xf32>
      %52 = vector.shape_cast %51 : vector<1x2x128xf32> to vector<2x128xf32>
      %53 = vector.shape_cast %50 : vector<2x128xf32> to vector<1x2x128xf32>
      tpu.vector_store %arg6[%c0_43, %c0_44, %c0_45], %53 {strides = array<i32>} : memref<1x2x128xf32, #tpu.memory_space<vmem>>, vector<1x2x128xf32>,
      %cst_46 = arith.constant 0.000000e+00 : f32
      %54 = vector.broadcast %cst_46 : f32 to vector<2x128xf32>
      %c0_47 = arith.constant 0 : index
      %c0_48 = arith.constant 0 : index
      %c0_49 = arith.constant 0 : index
      %55 = vector.load %arg7[%c0_47, %c0_48, %c0_49] : memref<1x2x128xf32, #tpu.memory_space<vmem>>, vector<1x2x128xf32>
      %56 = vector.shape_cast %55 : vector<1x2x128xf32> to vector<2x128xf32>
      %57 = vector.shape_cast %54 : vector<2x128xf32> to vector<1x2x128xf32>
      tpu.vector_store %arg7[%c0_47, %c0_48, %c0_49], %57 {strides = array<i32>} : memref<1x2x128xf32, #tpu.memory_space<vmem>>, vector<1x2x128xf32>,
    } else {
    }
    %c0 = arith.constant 0 : index
    %c0_1 = arith.constant 0 : index
    %c0_2 = arith.constant 0 : index
    %3 = vector.load %arg2[%c0, %c0_1, %c0_2] : memref<2x8x128xf32, #tpu.memory_space<vmem>>, vector<2x8x128xf32>
    %c0_3 = arith.constant 0 : index
    %c0_4 = arith.constant 0 : index
    %c0_5 = arith.constant 0 : index
    %4 = vector.load %arg3[%c0_3, %c0_4, %c0_5] : memref<2x8x128xf32, #tpu.memory_space<vmem>>, vector<2x8x128xf32>
    %5 = arith.negf %3 : vector<2x8x128xf32>
    %6 = math.exp %5 : vector<2x8x128xf32>
    %cst = arith.constant 1.000000e+00 : f32
    %7 = vector.broadcast %cst : f32 to vector<2x8x128xf32>
    %8 = arith.addf %7, %6 : vector<2x8x128xf32>
    %9 = arith.divf %7, %8 : vector<2x8x128xf32>
    %c0_6 = arith.constant 0 : index
    %c0_7 = arith.constant 0 : index
    %c0_8 = arith.constant 0 : index
    %10 = vector.load %arg4[%c0_6, %c0_7, %c0_8] : memref<1x2x128xf32, #tpu.memory_space<vmem>>, vector<1x2x128xf32>
    %11 = vector.shape_cast %10 : vector<1x2x128xf32> to vector<2x128xf32>
    %cst_9 = arith.constant dense<0.000000e+00> : vector<2x128xf32>
    %12 = vector.multi_reduction <add>, %9, %cst_9 [1] : vector<2x8x128xf32> to vector<2x128xf32>
    %13 = arith.addf %11, %12 : vector<2x128xf32>
    %c0_10 = arith.constant 0 : index
    %c0_11 = arith.constant 0 : index
    %c0_12 = arith.constant 0 : index
    %14 = vector.load %arg4[%c0_10, %c0_11, %c0_12] : memref<1x2x128xf32, #tpu.memory_space<vmem>>, vector<1x2x128xf32>
    %15 = vector.shape_cast %14 : vector<1x2x128xf32> to vector<2x128xf32>
    %16 = vector.shape_cast %13 : vector<2x128xf32> to vector<1x2x128xf32>
    tpu.vector_store %arg4[%c0_10, %c0_11, %c0_12], %16 {strides = array<i32>} : memref<1x2x128xf32, #tpu.memory_space<vmem>>, vector<1x2x128xf32>,
    %c0_13 = arith.constant 0 : index
    %c0_14 = arith.constant 0 : index
    %c0_15 = arith.constant 0 : index
    %17 = vector.load %arg5[%c0_13, %c0_14, %c0_15] : memref<1x2x128xf32, #tpu.memory_space<vmem>>, vector<1x2x128xf32>
    %18 = vector.shape_cast %17 : vector<1x2x128xf32> to vector<2x128xf32>
    %cst_16 = arith.constant dense<0.000000e+00> : vector<2x128xf32>
    %19 = vector.multi_reduction <add>, %4, %cst_16 [1] : vector<2x8x128xf32> to vector<2x128xf32>
    %20 = arith.addf %18, %19 : vector<2x128xf32>
    %c0_17 = arith.constant 0 : index
    %c0_18 = arith.constant 0 : index
    %c0_19 = arith.constant 0 : index
    %21 = vector.load %arg5[%c0_17, %c0_18, %c0_19] : memref<1x2x128xf32, #tpu.memory_space<vmem>>, vector<1x2x128xf32>
    %22 = vector.shape_cast %21 : vector<1x2x128xf32> to vector<2x128xf32>
    %23 = vector.shape_cast %20 : vector<2x128xf32> to vector<1x2x128xf32>
    tpu.vector_store %arg5[%c0_17, %c0_18, %c0_19], %23 {strides = array<i32>} : memref<1x2x128xf32, #tpu.memory_space<vmem>>, vector<1x2x128xf32>,
    %c0_20 = arith.constant 0 : index
    %c0_21 = arith.constant 0 : index
    %c0_22 = arith.constant 0 : index
    %24 = vector.load %arg6[%c0_20, %c0_21, %c0_22] : memref<1x2x128xf32, #tpu.memory_space<vmem>>, vector<1x2x128xf32>
    %25 = vector.shape_cast %24 : vector<1x2x128xf32> to vector<2x128xf32>
    %26 = arith.mulf %9, %4 : vector<2x8x128xf32>
    %cst_23 = arith.constant dense<0.000000e+00> : vector<2x128xf32>
    %27 = vector.multi_reduction <add>, %26, %cst_23 [1] : vector<2x8x128xf32> to vector<2x128xf32>
    %28 = arith.addf %25, %27 : vector<2x128xf32>
    %c0_24 = arith.constant 0 : index
    %c0_25 = arith.constant 0 : index
    %c0_26 = arith.constant 0 : index
    %29 = vector.load %arg6[%c0_24, %c0_25, %c0_26] : memref<1x2x128xf32, #tpu.memory_space<vmem>>, vector<1x2x128xf32>
    %30 = vector.shape_cast %29 : vector<1x2x128xf32> to vector<2x128xf32>
    %31 = vector.shape_cast %28 : vector<2x128xf32> to vector<1x2x128xf32>
    tpu.vector_store %arg6[%c0_24, %c0_25, %c0_26], %31 {strides = array<i32>} : memref<1x2x128xf32, #tpu.memory_space<vmem>>, vector<1x2x128xf32>,
    %c0_27 = arith.constant 0 : index
    %c0_28 = arith.constant 0 : index
    %c0_29 = arith.constant 0 : index
    %32 = vector.load %arg7[%c0_27, %c0_28, %c0_29] : memref<1x2x128xf32, #tpu.memory_space<vmem>>, vector<1x2x128xf32>
    %33 = vector.shape_cast %32 : vector<1x2x128xf32> to vector<2x128xf32>
    %34 = arith.mulf %9, %9 : vector<2x8x128xf32>
    %35 = arith.mulf %4, %4 : vector<2x8x128xf32>
    %36 = arith.addf %34, %35 : vector<2x8x128xf32>
    %cst_30 = arith.constant dense<0.000000e+00> : vector<2x128xf32>
    %37 = vector.multi_reduction <add>, %36, %cst_30 [1] : vector<2x8x128xf32> to vector<2x128xf32>
    %38 = arith.addf %33, %37 : vector<2x128xf32>
    %c0_31 = arith.constant 0 : index
    %c0_32 = arith.constant 0 : index
    %c0_33 = arith.constant 0 : index
    %39 = vector.load %arg7[%c0_31, %c0_32, %c0_33] : memref<1x2x128xf32, #tpu.memory_space<vmem>>, vector<1x2x128xf32>
    %40 = vector.shape_cast %39 : vector<1x2x128xf32> to vector<2x128xf32>
    %41 = vector.shape_cast %38 : vector<2x128xf32> to vector<1x2x128xf32>
    tpu.vector_store %arg7[%c0_31, %c0_32, %c0_33], %41 {strides = array<i32>} : memref<1x2x128xf32, #tpu.memory_space<vmem>>, vector<1x2x128xf32>,
    return
  }
  func.func @transform_0(%arg0: i32, %arg1: i32) -> (i32, i32, i32) {
    %c1_i32 = arith.constant 1 : i32
    %0 = arith.muli %arg0, %c1_i32 : i32
    %1 = arith.addi %0, %arg1 : i32
    %c0_i32 = arith.constant 0 : i32
    %c0_i32_0 = arith.constant 0 : i32
    %c0_i32_1 = arith.constant 0 : i32
    return %c0_i32, %1, %c0_i32_0 : i32, i32, i32
  }
  func.func @transform_1(%arg0: i32, %arg1: i32) -> (i32, i32, i32) {
    %c1_i32 = arith.constant 1 : i32
    %0 = arith.muli %arg0, %c1_i32 : i32
    %1 = arith.addi %0, %arg1 : i32
    %c0_i32 = arith.constant 0 : i32
    %c0_i32_0 = arith.constant 0 : i32
    %c0_i32_1 = arith.constant 0 : i32
    return %c0_i32, %1, %c0_i32_0 : i32, i32, i32
  }
  func.func @transform_2(%arg0: i32, %arg1: i32) -> (i32, i32, i32) {
    %c0_i32 = arith.constant 0 : i32
    %c0_i32_0 = arith.constant 0 : i32
    %c0_i32_1 = arith.constant 0 : i32
    return %arg0, %c0_i32, %c0_i32_0 : i32, i32, i32
  }
  func.func @transform_3(%arg0: i32, %arg1: i32) -> (i32, i32, i32) {
    %c0_i32 = arith.constant 0 : i32
    %c0_i32_0 = arith.constant 0 : i32
    %c0_i32_1 = arith.constant 0 : i32
    return %arg0, %c0_i32, %c0_i32_0 : i32, i32, i32
  }
  func.func @transform_4(%arg0: i32, %arg1: i32) -> (i32, i32, i32) {
    %c0_i32 = arith.constant 0 : i32
    %c0_i32_0 = arith.constant 0 : i32
    %c0_i32_1 = arith.constant 0 : i32
    return %arg0, %c0_i32, %c0_i32_0 : i32, i32, i32
  }
  func.func @transform_5(%arg0: i32, %arg1: i32) -> (i32, i32, i32) {
    %c0_i32 = arith.constant 0 : i32
    %c0_i32_0 = arith.constant 0 : i32
    %c0_i32_1 = arith.constant 0 : i32
    return %arg0, %c0_i32, %c0_i32_0 : i32, i32, i32
  }
}

</mosaic_0001>

<llo_original>
// kernel: tpu_custom_call.1
$region0: #{tpu_custom_call.1}
  #allocation0 [shape = 'u32[]', space=smem, size = 0x4, offset = 0x4, fixed_abs, tag = 'smem constant byte address 0x4 - core index']
  #allocation1 [shape = 'u32[144,128]{1,0:T(1,128)}', space=vmem, size = 0x12000, scoped, tag = 'internal scratch']
  %s0 = inlined_call_operand.hbm [shape: f32[2,16,128], index: 0, kind: input, shape index: {}]
  %s1 = inlined_call_operand.hbm [shape: f32[2,16,128], index: 1, kind: input, shape index: {}]
  %s2 = inlined_call_operand.hbm [shape: f32[2,2,128], index: 2, kind: output, shape index: {0}]
  %s3 = inlined_call_operand.hbm [shape: f32[2,2,128], index: 3, kind: output, shape index: {1}]
  %s4 = inlined_call_operand.hbm [shape: f32[2,2,128], index: 4, kind: output, shape index: {2}]
  %s5 = inlined_call_operand.hbm [shape: f32[2,2,128], index: 5, kind: output, shape index: {3}]
  %6 = xla_tuple %s2, %s3, %s4, %s5
  %s7 = sld [smem:[#allocation0]]
  $region77: #{tpu_custom_call.1} parent=0
    _
  %s9 = ssub.s32 1, %s7
  %s10 = scalar_select 0, %s9, %s7
  $region1: #{tpu_custom_call.1} parent=0
    #allocation2 [shape = 'u8[16384]{0}', space=vmem, size = 0x4000, scoped, tag = 'input window, operand 0']
    #allocation3 [shape = 's32[2]{0}', space=sflag, size = 0x8, scoped, tag = 'scoped memory for tpu_custom_call.1']
    #allocation4 [shape = 's32[2]{0}', space=sflag, size = 0x8, scoped, tag = 'scoped memory for tpu_custom_call.1']
    #allocation5 [shape = 'u8[16384]{0}', space=vmem, size = 0x4000, scoped, tag = 'input window, operand 1']
    #allocation6 [shape = 's32[2]{0}', space=sflag, size = 0x8, scoped, tag = 'scoped memory for tpu_custom_call.1']
    #allocation7 [shape = 'u8[2048]{0}', space=vmem, size = 0x800, scoped, tag = 'output window, operand 0']
    #allocation8 [shape = 'u8[2048]{0}', space=vmem, size = 0x800, scoped, tag = 'output window, operand 1']
    #allocation9 [shape = 's32[2]{0}', space=sflag, size = 0x8, scoped, tag = 'scoped memory for tpu_custom_call.1']
    #allocation10 [shape = 'u8[2048]{0}', space=vmem, size = 0x800, scoped, tag = 'output window, operand 2']
    #allocation11 [shape = 'u8[2048]{0}', space=vmem, size = 0x800, scoped, tag = 'output window, operand 3']
    #allocation12 [shape = 's32[2]{0}', space=sflag, size = 0x8, scoped, tag = 'scoped memory for tpu_custom_call.1']
    %11 = vsyncpa [#allocation3], 0
    %s12 = scalar_lea.sflag [#allocation3], 1
    %13 = vsyncpa %s12, 0
    %14 = vsyncpa [#allocation6], 0
    %s15 = scalar_lea.sflag [#allocation6], 1
    %16 = vsyncpa %s15, 0
    %17 = vsyncpa [#allocation4], 0
    %s18 = scalar_lea.sflag [#allocation4], 1
    %19 = vsyncpa %s18, 0
    %20 = vsyncpa [#allocation9], 0
    %s21 = scalar_lea.sflag [#allocation9], 1
    %22 = vsyncpa %s21, 0
    %23 = vsyncpa [#allocation12], 0
    %s24 = scalar_lea.sflag [#allocation12], 1
    %25 = vsyncpa %s24, 0
    loop: start=0, step=1, limit=4
    $region2: #{tpu_custom_call.1} parent=1 // loop_pre_header
      _
    $region3: #{tpu_custom_call.1} parent=1 // loop_header
      %s27 = sphi 0, %s31
      %p28 = scmp.ge.s32.totalorder %s27, 4
      %s34 = sphi 0, %s46
      %s35 = sphi 0, %s42
      %s36 = sphi 0, %s34
      %s37 = sphi 0, %s35
      %s38 = sphi 0, %s36
      %s39 = sphi 0, %s37
      %s51 = sphi 0, %s53
      %s54 = sphi 0, %s51
      %s55 = sphi 0, %s54
      %s71 = sphi 0, %s55
      %s79 = sphi 0, %s81
      %s82 = sphi 0, %s79
      %s83 = sphi 0, %s82
      %s99 = sphi 0, %s83
      %s105 = sphi 0, %s107
      %s108 = sphi 0, %s105
      %s109 = sphi 0, %s108
      %s125 = sphi 0, %s109
      %s131 = sphi 0, %s133
      %s134 = sphi 0, %s131
      %s135 = sphi 0, %s134
      %s151 = sphi 0, %s135
      %s157 = sphi 0, %s159
      %s160 = sphi 0, %s157
      %s161 = sphi 0, %s160
      %s177 = sphi 0, %s161
      %s183 = sphi 0, %s185
      %s186 = sphi 0, %s183
      %s187 = sphi 0, %s186
      %s203 = sphi 0, %s187
    $region4: #{tpu_custom_call.1} parent=1 // loop_header_branch
      %30 = sbr.rel (%p28) target = $region8
    $region5: #{tpu_custom_call.1} parent=1 // loop_body
      %s32 = ssub.s32 %s27, 1
      %s33 = ssub.s32 %s27, 2
      %s40 = sadd.s32 1, %s35
      %p41 = scmp.ge.s32.totalorder %s40, 1
      %s42 = scalar_select %p41, 0, %s40
      %s43 = sadd.s32 1, %s34
      %s44 = scalar_select %p41, %s43, %s34
      %p45 = scmp.ge.s32.totalorder %s44, 2
      %s46 = scalar_select %p45, 0, %s44
      %s47 = sadd.s32 %s34, %s35
      %s48 = sadd.s32 %s46, %s42
      %s49 = ssub.s32 %s47, %s48
      %p50 = scmp.eq.s32.totalorder %s49, 0
      %s52 = sadd.s32 %s51, 1
      %s53 = scalar_select %p50, %s51, %s52
      %p56 = pneg %p50
      %p57 = scmp.eq.s32.totalorder %s27, 1
      %p58 = por %p56, %p57
      %p59 = scmp.ne.s32.totalorder %s51, %s54
      %p60 = scmp.eq.s32.totalorder %s27, 0
      %p61 = por %p59, %p60
      %p62 = scmp.ne.s32.totalorder %s51, %s54
      %p63 = scmp.eq.s32.totalorder %s32, 1
      %p64 = por %p62, %p63
      %p65 = scmp.ne.s32.totalorder %s54, %s55
      %p66 = scmp.eq.s32.totalorder %s32, 0
      %p67 = por %p65, %p66
      %p68 = scmp.ne.s32.totalorder %s54, %s55
      %p69 = scmp.eq.s32.totalorder %s33, 1
      %p70 = por %p68, %p69
      %p72 = scmp.ne.s32.totalorder %s55, %s71
      %p73 = scmp.eq.s32.totalorder %s33, 0
      %p74 = por %p72, %p73
      %s75 = sadd.s32 %s34, %s35
      %s76 = sadd.s32 %s46, %s42
      %s77 = ssub.s32 %s75, %s76
      %p78 = scmp.eq.s32.totalorder %s77, 0
      %s80 = sadd.s32 %s79, 1
      %s81 = scalar_select %p78, %s79, %s80
      %p84 = pneg %p78
      %p85 = scmp.eq.s32.totalorder %s27, 1
      %p86 = por %p84, %p85
      %p87 = scmp.ne.s32.totalorder %s79, %s82
      %p88 = scmp.eq.s32.totalorder %s27, 0
      %p89 = por %p87, %p88
      %p90 = scmp.ne.s32.totalorder %s79, %s82
      %p91 = scmp.eq.s32.totalorder %s32, 1
      %p92 = por %p90, %p91
      %p93 = scmp.ne.s32.totalorder %s82, %s83
      %p94 = scmp.eq.s32.totalorder %s32, 0
      %p95 = por %p93, %p94
      %p96 = scmp.ne.s32.totalorder %s82, %s83
      %p97 = scmp.eq.s32.totalorder %s33, 1
      %p98 = por %p96, %p97
      %p100 = scmp.ne.s32.totalorder %s83, %s99
      %p101 = scmp.eq.s32.totalorder %s33, 0
      %p102 = por %p100, %p101
      %s103 = ssub.s32 %s34, %s46
      %p104 = scmp.eq.s32.totalorder %s103, 0
      %s106 = sadd.s32 %s105, 1
      %s107 = scalar_select %p104, %s105, %s106
      %p110 = pneg %p104
      %p111 = scmp.eq.s32.totalorder %s27, 1
      %p112 = por %p110, %p111
      %p113 = scmp.ne.s32.totalorder %s105, %s108
      %p114 = scmp.eq.s32.totalorder %s27, 0
      %p115 = por %p113, %p114
      %p116 = scmp.ne.s32.totalorder %s105, %s108
      %p117 = scmp.eq.s32.totalorder %s32, 1
      %p118 = por %p116, %p117
      %p119 = scmp.ne.s32.totalorder %s108, %s109
      %p120 = scmp.eq.s32.totalorder %s32, 0
      %p121 = por %p119, %p120
      %p122 = scmp.ne.s32.totalorder %s108, %s109
      %p123 = scmp.eq.s32.totalorder %s33, 1
      %p124 = por %p122, %p123
      %p126 = scmp.ne.s32.totalorder %s109, %s125
      %p127 = scmp.eq.s32.totalorder %s33, 0
      %p128 = por %p126, %p127
      %s129 = ssub.s32 %s34, %s46
      %p130 = scmp.eq.s32.totalorder %s129, 0
      %s132 = sadd.s32 %s131, 1
      %s133 = scalar_select %p130, %s131, %s132
      %p136 = pneg %p130
      %p137 = scmp.eq.s32.totalorder %s27, 1
      %p138 = por %p136, %p137
      %p139 = scmp.ne.s32.totalorder %s131, %s134
      %p140 = scmp.eq.s32.totalorder %s27, 0
      %p141 = por %p139, %p140
      %p142 = scmp.ne.s32.totalorder %s131, %s134
      %p143 = scmp.eq.s32.totalorder %s32, 1
      %p144 = por %p142, %p143
      %p145 = scmp.ne.s32.totalorder %s134, %s135
      %p146 = scmp.eq.s32.totalorder %s32, 0
      %p147 = por %p145, %p146
      %p148 = scmp.ne.s32.totalorder %s134, %s135
      %p149 = scmp.eq.s32.totalorder %s33, 1
      %p150 = por %p148, %p149
      %p152 = scmp.ne.s32.totalorder %s135, %s151
      %p153 = scmp.eq.s32.totalorder %s33, 0
      %p154 = por %p152, %p153
      %s155 = ssub.s32 %s34, %s46
      %p156 = scmp.eq.s32.totalorder %s155, 0
      %s158 = sadd.s32 %s157, 1
      %s159 = scalar_select %p156, %s157, %s158
      %p162 = pneg %p156
      %p163 = scmp.eq.s32.totalorder %s27, 1
      %p164 = por %p162, %p163
      %p165 = scmp.ne.s32.totalorder %s157, %s160
      %p166 = scmp.eq.s32.totalorder %s27, 0
      %p167 = por %p165, %p166
      %p168 = scmp.ne.s32.totalorder %s157, %s160
      %p169 = scmp.eq.s32.totalorder %s32, 1
      %p170 = por %p168, %p169
      %p171 = scmp.ne.s32.totalorder %s160, %s161
      %p172 = scmp.eq.s32.totalorder %s32, 0
      %p173 = por %p171, %p172
      %p174 = scmp.ne.s32.totalorder %s160, %s161
      %p175 = scmp.eq.s32.totalorder %s33, 1
      %p176 = por %p174, %p175
      %p178 = scmp.ne.s32.totalorder %s161, %s177
      %p179 = scmp.eq.s32.totalorder %s33, 0
      %p180 = por %p178, %p179
      %s181 = ssub.s32 %s34, %s46
      %p182 = scmp.eq.s32.totalorder %s181, 0
      %s184 = sadd.s32 %s183, 1
      %s185 = scalar_select %p182, %s183, %s184
      %p188 = pneg %p182
      %p189 = scmp.eq.s32.totalorder %s27, 1
      %p190 = por %p188, %p189
      %p191 = scmp.ne.s32.totalorder %s183, %s186
      %p192 = scmp.eq.s32.totalorder %s27, 0
      %p193 = por %p191, %p192
      %p194 = scmp.ne.s32.totalorder %s183, %s186
      %p195 = scmp.eq.s32.totalorder %s32, 1
      %p196 = por %p194, %p195
      %p197 = scmp.ne.s32.totalorder %s186, %s187
      %p198 = scmp.eq.s32.totalorder %s32, 0
      %p199 = por %p197, %p198
      %p200 = scmp.ne.s32.totalorder %s186, %s187
      %p201 = scmp.eq.s32.totalorder %s33, 1
      %p202 = por %p200, %p201
      %p204 = scmp.ne.s32.totalorder %s187, %s203
      %p205 = scmp.eq.s32.totalorder %s33, 0
      %p206 = por %p204, %p205
      %p207 = scmp.le.s32.totalorder 1, %s27
      %p208 = scmp.lt.s32.totalorder %s27, 3
      %p209 = pnand %p207, %p208
      %p210 = pneg %p209
      // Predicated region
      $region9: #{tpu_custom_call.1} parent=5 // pred_check
        _
      $region10: #{tpu_custom_call.1} parent=5 // pred_check_branch
        %212 = sbr.rel (%p209) target = $region12
      $region11: #{tpu_custom_call.1} parent=5 // pred_region
        %s213 = ssub.s32 %s27, 1
      $region12: #{tpu_custom_call.1} parent=5 // pred_fallthru
        _
      %p214 = scmp.lt.s32.totalorder %s27, 2
      // Predicated region
      $region13: #{tpu_custom_call.1} parent=5 // pred_check
        %p215 = pneg %p214
      $region14: #{tpu_custom_call.1} parent=5 // pred_check_branch
        %217 = sbr.rel (%p215) target = $region16
      $region15: #{tpu_custom_call.1} parent=5 // pred_region
        // Predicated region
        $region17: #{tpu_custom_call.1} parent=15 // pred_check
          %p218 = pneg %p61
        $region18: #{tpu_custom_call.1} parent=15 // pred_check_branch
          %220 = sbr.rel (%p218) target = $region20
        $region19: #{tpu_custom_call.1} parent=15 // pred_region
          %s221 = sand.u32 %s51, 1
          %s222 = scalar_lea.sflag [#allocation3], %s221
          %s223 = sand.u32 %s51, 1
          %s224 = smul.addr %s223, 16
          %s225 = scalar_lea.vmem [#allocation2], %s224
          %s226 = sadd.s32 %s34, %s35
          %s228 = ssub.s32 256, 256
          %229 = vsyncadd %s222, %s228
          %s230 = smul.addr %s226, 128
          %s231 = scalar_lea.hbm %s0, %s230
          %s232 = sshll.u32 %s225, 4
          %s233 = int_to_ptr.vmem [resolvable:$true] %s232
          %238 = dma.hbm_to_vmem [thread:$0]  %s231, 256, %s233, %s222, 256, 128, 8
        $region20: #{tpu_custom_call.1} parent=15 // pred_fallthru
          _
        // Predicated region
        $region21: #{tpu_custom_call.1} parent=15 // pred_check
          %p239 = pneg %p89
        $region22: #{tpu_custom_call.1} parent=15 // pred_check_branch
          %241 = sbr.rel (%p239) target = $region24
        $region23: #{tpu_custom_call.1} parent=15 // pred_region
          %s242 = sand.u32 %s79, 1
          %s243 = scalar_lea.sflag [#allocation6], %s242
          %s244 = sand.u32 %s79, 1
          %s245 = smul.addr %s244, 16
          %s246 = scalar_lea.vmem [#allocation5], %s245
          %s247 = sadd.s32 %s34, %s35
          %s249 = ssub.s32 256, 256
          %250 = vsyncadd %s243, %s249
          %s251 = smul.addr %s247, 128
          %s252 = scalar_lea.hbm %s1, %s251
          %s253 = sshll.u32 %s246, 4
          %s254 = int_to_ptr.vmem [resolvable:$true] %s253
          %259 = dma.hbm_to_vmem [thread:$0]  %s252, 256, %s254, %s243, 256, 128, 8
        $region24: #{tpu_custom_call.1} parent=15 // pred_fallthru
          _
      $region16: #{tpu_custom_call.1} parent=5 // pred_fallthru
        _
      %p260 = scmp.le.s32.totalorder 1, %s27
      %p261 = scmp.lt.s32.totalorder %s27, 3
      %p262 = pnand %p260, %p261
      %p263 = pneg %p262
      // Predicated region
      $region25: #{tpu_custom_call.1} parent=5 // pred_check
        _
      $region26: #{tpu_custom_call.1} parent=5 // pred_check_branch
        %265 = sbr.rel (%p262) target = $region28
      $region27: #{tpu_custom_call.1} parent=5 // pred_region
        %s266 = ssub.s32 %s27, 1
        %s267 = sand.u32 %s54, 1
        %s268 = scalar_lea.sflag [#allocation3], %s267
        %s269 = sand.u32 %s54, 1
        %s270 = smul.addr %s269, 16
        %s271 = scalar_lea.vmem [#allocation2], %s270
        // Predicated region
        $region29: #{tpu_custom_call.1} parent=27 // pred_check
          %p272 = pneg %p67
        $region30: #{tpu_custom_call.1} parent=27 // pred_check_branch
          %274 = sbr.rel (%p272) target = $region32
        $region31: #{tpu_custom_call.1} parent=27 // pred_region
          %275 = dma.done %s268, 256
        $region32: #{tpu_custom_call.1} parent=27 // pred_fallthru
          _
        %s276 = sand.u32 %s82, 1
        %s277 = scalar_lea.sflag [#allocation6], %s276
        %s278 = sand.u32 %s82, 1
        %s279 = smul.addr %s278, 16
        %s280 = scalar_lea.vmem [#allocation5], %s279
        // Predicated region
        $region33: #{tpu_custom_call.1} parent=27 // pred_check
          %p281 = pneg %p95
        $region34: #{tpu_custom_call.1} parent=27 // pred_check_branch
          %283 = sbr.rel (%p281) target = $region36
        $region35: #{tpu_custom_call.1} parent=27 // pred_region
          %284 = dma.done %s277, 256
        $region36: #{tpu_custom_call.1} parent=27 // pred_fallthru
          _
        %s285 = sand.u32 %s54, 1
        %s286 = scalar_lea.sflag [#allocation3], %s285
        %s287 = sand.u32 %s54, 1
        %s288 = smul.addr %s287, 16
        %s289 = scalar_lea.vmem [#allocation2], %s288
        %p290 = pneg %p67
        %p291 = pneg %p64
        %s292 = sand.u32 %s82, 1
        %s293 = scalar_lea.sflag [#allocation6], %s292
        %s294 = sand.u32 %s82, 1
        %s295 = smul.addr %s294, 16
        %s296 = scalar_lea.vmem [#allocation5], %s295
        %p297 = pneg %p95
        %p298 = pneg %p92
        %p299 = pneg %p121
        %p300 = pneg %p118
        %s301 = sand.u32 %s108, 1
        %s302 = scalar_lea.sflag [#allocation4], %s301
        %s303 = sand.u32 %s108, 1
        %s304 = smul.addr %s303, 2
        %s305 = scalar_lea.vmem [#allocation7], %s304
        %p306 = pneg %p147
        %p307 = pneg %p144
        %s308 = sand.u32 %s32, 1
        %s309 = scalar_lea.sflag [#allocation9], %s308
        %s310 = sand.u32 %s134, 1
        %s311 = smul.addr %s310, 2
        %s312 = scalar_lea.vmem [#allocation8], %s311
        %p313 = pneg %p173
        %p314 = pneg %p170
        %s315 = sand.u32 %s32, 1
        %s316 = scalar_lea.sflag [#allocation9], %s315
        %s317 = sand.u32 %s160, 1
        %s318 = smul.addr %s317, 2
        %s319 = scalar_lea.vmem [#allocation10], %s318
        %p320 = pneg %p199
        %p321 = pneg %p196
        %s322 = sand.u32 %s186, 1
        %s323 = scalar_lea.sflag [#allocation12], %s322
        %s324 = sand.u32 %s186, 1
        %s325 = smul.addr %s324, 2
        %s326 = scalar_lea.vmem [#allocation11], %s325
        %s327 = sadd.s32 %s36, %s37
        %s328 = sadd.s32 %s36, %s37
        %p329 = scmp.eq.s32.totalorder %s37, 0
        // Predicated region
        $region37: #{tpu_custom_call.1} parent=27 // pred_check
          %p330 = pneg %p329
        $region38: #{tpu_custom_call.1} parent=27 // pred_check_branch
          %332 = sbr.rel (%p330) target = $region40
        $region39: #{tpu_custom_call.1} parent=27 // pred_region
          %333 = vst [vmem:[%s305] sm:$0x3] 0.0
          %334 = vst [vmem:[%s312] sm:$0x3] 0.0
          %335 = vst [vmem:[%s319] sm:$0x3] 0.0
          %336 = vst [vmem:[%s326] sm:$0x3] 0.0
        $region40: #{tpu_custom_call.1} parent=27 // pred_fallthru
          _
        %v337 = vld [vmem:[%s271] sm:$0xff]
        %v338 = vld [vmem:[%s271 + $0x8] sm:$0xff]
        %v339 = vld [vmem:[%s280] sm:$0xff]
        %v340 = vld [vmem:[%s280 + $0x8] sm:$0xff]
        %v341 = vxor.u32 %v337, 2147483648
        %v342 = vxor.u32 %v338, 2147483648
        %v343 = vmul.f32 %v341, 1.442695
        %v344 = vpow.pop %v343
        %v345 = vmul.f32 %v342, 1.442695
        %v346 = vpow.pop %v345
        %v347 = vadd.f32 %v344, 1.0
        %v348 = vadd.f32 %v346, 1.0
        %v349 = vrcp.pop %v347
        %v350 = vmul.f32 1.0, %v349
        %v351 = vrcp.pop %v348
        %v352 = vmul.f32 1.0, %v351
        %v353 = vld [vmem:[%s305] sm:$0x3]
        %v354 = vrot.slane %v350, 4
        %v355 = vadd.f32 %v350, %v354
        %v356 = vrot.slane %v355, 2
        %v357 = vadd.f32 %v355, %v356
        %v358 = vrot.slane %v357, 1
        %v359 = vadd.f32 %v357, %v358
        %v360 = vrot.slane %v352, 4
        %v361 = vadd.f32 %v352, %v360
        %v362 = vrot.slane %v361, 2
        %v363 = vadd.f32 %v361, %v362
        %v364 = vrot.slane %v363, 1
        %v365 = vadd.f32 %v363, %v364
        %vm368 = vcmask 1041409
        %v369 = vsel %vm368, %v365, %v359
        %v371 = vadd.f32 %v353, %v369
        %372 = vst [vmem:[%s305] sm:$0x3] %v371
        %v373 = vld [vmem:[%s312] sm:$0x3]
        %v374 = vrot.slane %v339, 4
        %v375 = vadd.f32 %v339, %v374
        %v376 = vrot.slane %v375, 2
        %v377 = vadd.f32 %v375, %v376
        %v378 = vrot.slane %v377, 1
        %v379 = vadd.f32 %v377, %v378
        %v380 = vrot.slane %v340, 4
        %v381 = vadd.f32 %v340, %v380
        %v382 = vrot.slane %v381, 2
        %v383 = vadd.f32 %v381, %v382
        %v384 = vrot.slane %v383, 1
        %v385 = vadd.f32 %v383, %v384
        %v388 = vsel %vm368, %v385, %v379
        %v390 = vadd.f32 %v373, %v388
        %391 = vst [vmem:[%s312] sm:$0x3] %v390
        %v392 = vld [vmem:[%s319] sm:$0x3]
        %v393 = vmul.f32 %v350, %v339
        %v394 = vmul.f32 %v352, %v340
        %v395 = vrot.slane %v393, 4
        %v396 = vadd.f32 %v393, %v395
        %v397 = vrot.slane %v396, 2
        %v398 = vadd.f32 %v396, %v397
        %v399 = vrot.slane %v398, 1
        %v400 = vadd.f32 %v398, %v399
        %v401 = vrot.slane %v394, 4
        %v402 = vadd.f32 %v394, %v401
        %v403 = vrot.slane %v402, 2
        %v404 = vadd.f32 %v402, %v403
        %v405 = vrot.slane %v404, 1
        %v406 = vadd.f32 %v404, %v405
        %v409 = vsel %vm368, %v406, %v400
        %v411 = vadd.f32 %v392, %v409
        %412 = vst [vmem:[%s319] sm:$0x3] %v411
        %v413 = vld [vmem:[%s326] sm:$0x3]
        %v414 = vmul.f32 %v350, %v350
        %v415 = vmul.f32 %v352, %v352
        %v416 = vmul.f32 %v339, %v339
        %v417 = vmul.f32 %v340, %v340
        %v418 = vadd.f32 %v414, %v416
        %v419 = vadd.f32 %v415, %v417
        %v420 = vrot.slane %v418, 4
        %v421 = vadd.f32 %v418, %v420
        %v422 = vrot.slane %v421, 2
        %v423 = vadd.f32 %v421, %v422
        %v424 = vrot.slane %v423, 1
        %v425 = vadd.f32 %v423, %v424
        %v426 = vrot.slane %v419, 4
        %v427 = vadd.f32 %v419, %v426
        %v428 = vrot.slane %v427, 2
        %v429 = vadd.f32 %v427, %v428
        %v430 = vrot.slane %v429, 1
        %v431 = vadd.f32 %v429, %v430
        %v434 = vsel %vm368, %v431, %v425
        %v436 = vadd.f32 %v413, %v434
        %437 = vst [vmem:[%s326] sm:$0x3] %v436
        %s438 = sand.u32 %s108, 1
        %s439 = scalar_lea.sflag [#allocation4], %s438
        %s440 = sand.u32 %s108, 1
        %s441 = smul.addr %s440, 2
        %s442 = scalar_lea.vmem [#allocation7], %s441
        %s443 = sand.u32 %s32, 1
        %s444 = scalar_lea.sflag [#allocation9], %s443
        %s445 = sand.u32 %s134, 1
        %s446 = smul.addr %s445, 2
        %s447 = scalar_lea.vmem [#allocation8], %s446
        %s448 = sand.u32 %s32, 1
        %s449 = scalar_lea.sflag [#allocation9], %s448
        %s450 = sand.u32 %s160, 1
        %s451 = smul.addr %s450, 2
        %s452 = scalar_lea.vmem [#allocation10], %s451
        %s453 = sand.u32 %s186, 1
        %s454 = scalar_lea.sflag [#allocation12], %s453
        %s455 = sand.u32 %s186, 1
        %s456 = smul.addr %s455, 2
        %s457 = scalar_lea.vmem [#allocation11], %s456
        // Predicated region
        $region41: #{tpu_custom_call.1} parent=27 // pred_check
          %p458 = pneg %p118
        $region42: #{tpu_custom_call.1} parent=27 // pred_check_branch
          %460 = sbr.rel (%p458) target = $region44
        $region43: #{tpu_custom_call.1} parent=27 // pred_region
          %s462 = ssub.s32 32, 32
          %463 = vsyncadd %s439, %s462
          %s464 = smul.addr %s36, 32
          %s465 = scalar_lea.hbm %s2, %s464
          %s467 = sshll.u32 %s442, 4
          %s468 = int_to_ptr.vmem [resolvable:$true] %s467
          %470 = dma.vmem_to_hbm [thread:$0]  %s468, 32, %s465, %s439
        $region44: #{tpu_custom_call.1} parent=27 // pred_fallthru
          _
        // Predicated region
        $region45: #{tpu_custom_call.1} parent=27 // pred_check
          %p471 = pneg %p144
        $region46: #{tpu_custom_call.1} parent=27 // pred_check_branch
          %473 = sbr.rel (%p471) target = $region48
        $region47: #{tpu_custom_call.1} parent=27 // pred_region
          %s475 = ssub.s32 32, 32
          %476 = vsyncadd %s444, %s475
          %s477 = smul.addr %s36, 32
          %s478 = scalar_lea.hbm %s3, %s477
          %s480 = sshll.u32 %s447, 4
          %s481 = int_to_ptr.vmem [resolvable:$true] %s480
          %483 = dma.vmem_to_hbm [thread:$0]  %s481, 32, %s478, %s444
        $region48: #{tpu_custom_call.1} parent=27 // pred_fallthru
          _
        // Predicated region
        $region49: #{tpu_custom_call.1} parent=27 // pred_check
          %p484 = pneg %p170
        $region50: #{tpu_custom_call.1} parent=27 // pred_check_branch
          %486 = sbr.rel (%p484) target = $region52
        $region51: #{tpu_custom_call.1} parent=27 // pred_region
          %s488 = ssub.s32 32, 32
          %489 = vsyncadd %s449, %s488
          %s490 = smul.addr %s36, 32
          %s491 = scalar_lea.hbm %s4, %s490
          %s493 = sshll.u32 %s452, 4
          %s494 = int_to_ptr.vmem [resolvable:$true] %s493
          %496 = dma.vmem_to_hbm [thread:$0]  %s494, 32, %s491, %s449
        $region52: #{tpu_custom_call.1} parent=27 // pred_fallthru
          _
        // Predicated region
        $region53: #{tpu_custom_call.1} parent=27 // pred_check
          %p497 = pneg %p196
        $region54: #{tpu_custom_call.1} parent=27 // pred_check_branch
          %499 = sbr.rel (%p497) target = $region56
        $region55: #{tpu_custom_call.1} parent=27 // pred_region
          %s501 = ssub.s32 32, 32
          %502 = vsyncadd %s454, %s501
          %s503 = smul.addr %s36, 32
          %s504 = scalar_lea.hbm %s5, %s503
          %s506 = sshll.u32 %s457, 4
          %s507 = int_to_ptr.vmem [resolvable:$true] %s506
          %509 = dma.vmem_to_hbm [thread:$0]  %s507, 32, %s504, %s454
        $region56: #{tpu_custom_call.1} parent=27 // pred_fallthru
          _
      $region28: #{tpu_custom_call.1} parent=5 // pred_fallthru
        _
      %p510 = scmp.le.s32.totalorder 2, %s27
      // Predicated region
      $region57: #{tpu_custom_call.1} parent=5 // pred_check
        %p511 = pneg %p510
      $region58: #{tpu_custom_call.1} parent=5 // pred_check_branch
        %513 = sbr.rel (%p511) target = $region60
      $region59: #{tpu_custom_call.1} parent=5 // pred_region
        %s514 = ssub.s32 %s27, 2
        // Predicated region
        $region61: #{tpu_custom_call.1} parent=59 // pred_check
          %p515 = pneg %p124
        $region62: #{tpu_custom_call.1} parent=59 // pred_check_branch
          %517 = sbr.rel (%p515) target = $region64
        $region63: #{tpu_custom_call.1} parent=59 // pred_region
          %s518 = sand.u32 %s109, 1
          %s519 = scalar_lea.sflag [#allocation4], %s518
          %s520 = sand.u32 %s109, 1
          %s521 = smul.addr %s520, 2
          %s522 = scalar_lea.vmem [#allocation7], %s521
          %523 = dma.done %s519, 32
        $region64: #{tpu_custom_call.1} parent=59 // pred_fallthru
          _
        // Predicated region
        $region65: #{tpu_custom_call.1} parent=59 // pred_check
          %p524 = pneg %p150
        $region66: #{tpu_custom_call.1} parent=59 // pred_check_branch
          %526 = sbr.rel (%p524) target = $region68
        $region67: #{tpu_custom_call.1} parent=59 // pred_region
          %s527 = sand.u32 %s33, 1
          %s528 = scalar_lea.sflag [#allocation9], %s527
          %s529 = sand.u32 %s135, 1
          %s530 = smul.addr %s529, 2
          %s531 = scalar_lea.vmem [#allocation8], %s530
          %532 = dma.done %s528, 32
        $region68: #{tpu_custom_call.1} parent=59 // pred_fallthru
          _
        // Predicated region
        $region69: #{tpu_custom_call.1} parent=59 // pred_check
          %p533 = pneg %p176
        $region70: #{tpu_custom_call.1} parent=59 // pred_check_branch
          %535 = sbr.rel (%p533) target = $region72
        $region71: #{tpu_custom_call.1} parent=59 // pred_region
          %s536 = sand.u32 %s33, 1
          %s537 = scalar_lea.sflag [#allocation9], %s536
          %s538 = sand.u32 %s161, 1
          %s539 = smul.addr %s538, 2
          %s540 = scalar_lea.vmem [#allocation10], %s539
          %541 = dma.done %s537, 32
        $region72: #{tpu_custom_call.1} parent=59 // pred_fallthru
          _
        // Predicated region
        $region73: #{tpu_custom_call.1} parent=59 // pred_check
          %p542 = pneg %p202
        $region74: #{tpu_custom_call.1} parent=59 // pred_check_branch
          %544 = sbr.rel (%p542) target = $region76
        $region75: #{tpu_custom_call.1} parent=59 // pred_region
          %s545 = sand.u32 %s187, 1
          %s546 = scalar_lea.sflag [#allocation12], %s545
          %s547 = sand.u32 %s187, 1
          %s548 = smul.addr %s547, 2
          %s549 = scalar_lea.vmem [#allocation11], %s548
          %550 = dma.done %s546, 32
        $region76: #{tpu_custom_call.1} parent=59 // pred_fallthru
          _
      $region60: #{tpu_custom_call.1} parent=5 // pred_fallthru
        _
    $region6: #{tpu_custom_call.1} parent=1 // loop_footer
      %s31 = sadd.s32 1, %s27
    $region7: #{tpu_custom_call.1} parent=1 // loop_footer_branch
      %26 = sbr.rel target = $region3
    $region8: #{tpu_custom_call.1} parent=1 // loop_exit
      _
    %551 = vsyncpa [#allocation3], 1
    %s552 = scalar_lea.sflag [#allocation3], 1
    %553 = vsyncpa %s552, 1
    %554 = vsyncpa [#allocation6], 1
    %s555 = scalar_lea.sflag [#allocation6], 1
    %556 = vsyncpa %s555, 1
    %557 = vsyncpa [#allocation4], 1
    %s558 = scalar_lea.sflag [#allocation4], 1
    %559 = vsyncpa %s558, 1
    %560 = vsyncpa [#allocation9], 1
    %s561 = scalar_lea.sflag [#allocation9], 1
    %562 = vsyncpa %s561, 1
    %563 = vsyncpa [#allocation12], 1
    %s564 = scalar_lea.sflag [#allocation12], 1
    %565 = vsyncpa %s564, 1

</llo_original>
